<compile_context>
chip_gen: v6e
topology: v6e:2x2x1
jax: 0.10.0
libtpu: 0.0.40
codegen_flags: <defaults>
</compile_context>

<pallas_src>
import functools

import jax
import jax.numpy as jnp
from jax import lax
from jax.experimental import pallas as pl
from jax.experimental.pallas import tpu as pltpu


def _shift_flat(h, shift, size):
    """np.roll(h, shift, axis=1) with a static shift (slices + lane concat)."""
    s = shift % size
    if s == 0:
        return h
    return jnp.concatenate([h[:, size - s:], h[:, :size - s]], axis=1)


def _spatial_gate_kernel(H, W, dil, x_ref, w_red_ref, b_red_ref,
                         w_di_ref, b_di_ref, w_fin_ref, b_fin_ref,
                         mask_ref, o_ref):
    HW = H * W
    f32 = jnp.float32

    x = x_ref[0]                                                   # (C, HW)

    # --- 1x1 reduce conv (BN folded) + ReLU -> (mid, HW) ---
    h = jnp.dot(w_red_ref[...], x, preferred_element_type=f32) + b_red_ref[...]
    h = jnp.maximum(h, 0.0)

    # Static tap shifts, ky-major order (must match packed weights & masks).
    taps = []
    for ky in range(3):
        for kx in range(3):
            dy = (ky - 1) * dil
            dx = (kx - 1) * dil
            taps.append(((-(dy * W + dx)) % HW, dy == 0 and dx == 0))

    # --- two 3x3 dilated convs (BN folded) + ReLU, one MXU matmul each ---
    n_di = w_di_ref.shape[0]
    for ci in range(n_di):
        slabs = []
        for t, (shift, is_center) in enumerate(taps):
            if is_center:
                slabs.append(h)
            else:
                slabs.append(_shift_flat(h, shift, HW) * mask_ref[t])
        slab_cat = jnp.concatenate(slabs, axis=0)                  # (9*mid, HW)
        h = jnp.maximum(
            jnp.dot(w_di_ref[ci], slab_cat, preferred_element_type=f32)
            + b_di_ref[ci], 0.0)

    # --- final 1x1 conv -> single gate channel ---
    gate = (jnp.dot(w_fin_ref[...], h, preferred_element_type=f32)
            + b_fin_ref[...])                                      # (1, HW)

    # --- expand_as(x): broadcast the gate over all input channels ---
    o_ref[0] = jnp.broadcast_to(gate, o_ref.shape[1:]).astype(o_ref.dtype)


def _fold_bn(w, b, bn, eps=1e-5):
    """Fold eval-mode BatchNorm (gamma, beta, mean, var) into conv (w, b)."""
    gamma, beta, mean, var = bn
    scale = gamma * lax.rsqrt(var + eps)
    w_f = w * scale.reshape((-1,) + (1,) * (w.ndim - 1))
    b_f = (b - mean) * scale + beta
    return w_f, b_f


@functools.partial(jax.jit, static_argnames=("dilation",))
def spatial_gate(x, params, dilation=4):
    """Pallas TPU forward of SpatialGate (eval-mode BN). x: (B, C, H, W)."""
    (w_r, b_r, bn_r, w_d0, b_d0, bn_d0, w_d1, b_d1, bn_d1, w_f, b_f) = params
    B, C, H, W = x.shape
    mid = w_r.shape[0]
    HW = H * W

    # Fold BN into the preceding convs (parameter-only preprocessing).
    wr, br = _fold_bn(w_r[:, :, 0, 0], b_r, bn_r)              # (mid, C), (mid,)
    wd0, bd0 = _fold_bn(w_d0, b_d0, bn_d0)                     # (mid, mid, 3, 3)
    wd1, bd1 = _fold_bn(w_d1, b_d1, bn_d1)

    # Pack the 9 dilated taps along the contraction axis (ky-major order).
    def pack_taps(w):                                          # -> (mid, 9*mid)
        return jnp.concatenate(
            [w[:, :, ky, kx] for ky in range(3) for kx in range(3)], axis=1)

    w_di = jnp.stack([pack_taps(wd0), pack_taps(wd1)])         # (2, mid, 9*mid)
    b_di = jnp.stack([bd0, bd1])[:, :, None]                   # (2, mid, 1)
    w_fin = w_f[:, :, 0, 0]                                    # (1, mid)
    b_fin = b_f.reshape(1, 1)                                  # (1, 1)
    br = br[:, None]                                           # (mid, 1)

    # Zero-padding masks for the 9 dilated taps, on the flat pixel axis.
    yv = jnp.arange(H, dtype=jnp.int32).reshape(H, 1)
    xv = jnp.arange(W, dtype=jnp.int32).reshape(1, W)
    masks = []
    for ky in range(3):
        for kx in range(3):
            dy = (ky - 1) * dilation
            dx = (kx - 1) * dilation
            m = ((yv + dy >= 0) & (yv + dy < H) &
                 (xv + dx >= 0) & (xv + dx < W))
            masks.append(m.reshape(1, HW))
    tap_mask = jnp.stack(masks).astype(x.dtype)                # (9, 1, HW)

    # Channels-first, flat-spatial layout: free reshape, no transposes.
    x_flat = x.reshape(B, C, HW)

    def full_spec(a):
        return pl.BlockSpec(a.shape, lambda b: (0,) * a.ndim)

    kernel = functools.partial(_spatial_gate_kernel, H, W, dilation)
    out = pl.pallas_call(
        kernel,
        out_shape=jax.ShapeDtypeStruct((B, C, HW), x.dtype),
        grid_spec=pltpu.PrefetchScalarGridSpec(
            num_scalar_prefetch=0,
            grid=(B,),
            in_specs=[
                pl.BlockSpec((1, C, HW), lambda b: (b, 0, 0)),
                full_spec(wr), full_spec(br),
                full_spec(w_di), full_spec(b_di),
                full_spec(w_fin), full_spec(b_fin),
                full_spec(tap_mask),
            ],
            out_specs=pl.BlockSpec((1, C, HW), lambda b: (b, 0, 0)),
        ),
        compiler_params=pltpu.CompilerParams(
            dimension_semantics=("parallel",)),
    )(x_flat, wr, br, w_di, b_di, w_fin, b_fin, tap_mask)

    return out.reshape(B, C, H, W)


def _reference(x, params, dilation=4, eps=1e-5):
    """Pure-JAX/XLA mirror of the PyTorch SpatialGate forward (eval-mode BN)."""
    (w_r, b_r, bn_r, w_d0, b_d0, bn_d0, w_d1, b_d1, bn_d1, w_f, b_f) = params

    def conv(inp, w, b, dil=1, pad=0):
        y = lax.conv_general_dilated(
            inp, w, window_strides=(1, 1),
            padding=((pad, pad), (pad, pad)),
            rhs_dilation=(dil, dil),
            dimension_numbers=("NCHW", "OIHW", "NCHW"),
            precision=lax.Precision.HIGHEST)
        return y + b.reshape(1, -1, 1, 1)

    def bn(inp, p):
        gamma, beta, mean, var = p
        s = gamma / jnp.sqrt(var + eps)
        return inp * s.reshape(1, -1, 1, 1) + (beta - mean * s).reshape(1, -1, 1, 1)

    h = jax.nn.relu(bn(conv(x, w_r, b_r), bn_r))
    h = jax.nn.relu(bn(conv(h, w_d0, b_d0, dil=dilation, pad=dilation), bn_d0))
    h = jax.nn.relu(bn(conv(h, w_d1, b_d1, dil=dilation, pad=dilation), bn_d1))
    g = conv(h, w_f, b_f)                                      # (B, 1, H, W)
    return jnp.broadcast_to(g, x.shape)


if __name__ == "__main__":
    key = jax.random.PRNGKey(0)
    B, C, H, W = 2, 64, 16, 16        # reduction_ratio=16 -> mid channels = 4
    reduction = 16
    mid = C // reduction
    dil = 4

    ks = iter(jax.random.split(key, 32))

    def nrm(shape, scale=1.0):
        return jax.random.normal(next(ks), shape, jnp.float32) * scale

    x = nrm((B, C, H, W))

    def bn_params(n):
        return (1.0 + 0.1 * nrm((n,)),          # gamma
                0.1 * nrm((n,)),                # beta
                0.1 * nrm((n,)),                # running_mean
                jnp.abs(nrm((n,))) + 0.5)       # running_var

    w_r = nrm((mid, C, 1, 1), 0.2); b_r = nrm((mid,), 0.1); bn_r = bn_params(mid)
    w_d0 = nrm((mid, mid, 3, 3), 0.2); b_d0 = nrm((mid,), 0.1); bn_d0 = bn_params(mid)
    w_d1 = nrm((mid, mid, 3, 3), 0.2); b_d1 = nrm((mid,), 0.1); bn_d1 = bn_params(mid)
    w_f = nrm((1, mid, 1, 1), 0.2); b_f = nrm((1,), 0.1)

    params = (w_r, b_r, bn_r, w_d0, b_d0, bn_d0, w_d1, b_d1, bn_d1, w_f, b_f)

    out = spatial_gate(x, params, dilation=dil)
    out = jax.block_until_ready(out)

    ref = _reference(x, params, dilation=dil)
    assert out.shape == x.shape
    max_err = float(jnp.max(jnp.abs(out - ref)))
    assert jnp.allclose(out, ref, rtol=1e-3, atol=1e-3), \
        f"mismatch vs reference (max abs err {max_err})"
    print("KERNEL_OK")
</pallas_src>

<mosaic_0001>
module attributes {stable_mosaic.version = 11 : i64} {
  func.func @_spatial_gate_kernel(%arg0: i32, %arg1: memref<1x64x256xf32, #tpu.memory_space<vmem>>, %arg2: memref<4x64xf32, #tpu.memory_space<vmem>>, %arg3: memref<4x1xf32, #tpu.memory_space<vmem>>, %arg4: memref<2x4x36xf32, #tpu.memory_space<vmem>>, %arg5: memref<2x4x1xf32, #tpu.memory_space<vmem>>, %arg6: memref<1x4xf32, #tpu.memory_space<vmem>>, %arg7: memref<1x1xf32, #tpu.memory_space<vmem>>, %arg8: memref<9x1x256xf32, #tpu.memory_space<vmem>>, %arg9: memref<1x64x256xf32, #tpu.memory_space<vmem>>) attributes {dimension_semantics = [#tpu.dimension_semantics<parallel>], iteration_bounds = array<i64: 2>, scalar_prefetch = 0 : i64, scratch_operands = 0 : i64, tpu.core_type = #tpu.core_type<tc>, window_params = [{transform_indices = @transform_0, window_bounds = array<i64: 1, 64, 256>}, {pipeline_mode = #tpu.pipeline_mode<synchronous>, transform_indices = @transform_1, window_bounds = array<i64: 4, 64>}, {pipeline_mode = #tpu.pipeline_mode<synchronous>, transform_indices = @transform_2, window_bounds = array<i64: 4, 1>}, {pipeline_mode = #tpu.pipeline_mode<synchronous>, transform_indices = @transform_3, window_bounds = array<i64: 2, 4, 36>}, {pipeline_mode = #tpu.pipeline_mode<synchronous>, transform_indices = @transform_4, window_bounds = array<i64: 2, 4, 1>}, {pipeline_mode = #tpu.pipeline_mode<synchronous>, transform_indices = @transform_5, window_bounds = array<i64: 1, 4>}, {pipeline_mode = #tpu.pipeline_mode<synchronous>, transform_indices = @transform_6, window_bounds = array<i64: 1, 1>}, {pipeline_mode = #tpu.pipeline_mode<synchronous>, transform_indices = @transform_7, window_bounds = array<i64: 9, 1, 256>}, {transform_indices = @transform_8, window_bounds = array<i64: 1, 64, 256>}]} {
    %c0 = arith.constant 0 : index
    %c0_0 = arith.constant 0 : index
    %c0_1 = arith.constant 0 : index
    %0 = vector.load %arg1[%c0, %c0_0, %c0_1] : memref<1x64x256xf32, #tpu.memory_space<vmem>>, vector<1x64x256xf32>
    %1 = vector.shape_cast %0 : vector<1x64x256xf32> to vector<64x256xf32>
    %c0_2 = arith.constant 0 : index
    %c0_3 = arith.constant 0 : index
    %2 = vector.load %arg2[%c0_2, %c0_3] : memref<4x64xf32, #tpu.memory_space<vmem>>, vector<4x64xf32>
    %cst = arith.constant dense<0.000000e+00> : vector<4x256xf32>
    %3 = tpu.matmul %2, %1, %cst {dimension_numbers = #tpu.dot_dimension_numbers<[1], [0], [0], [1], [0, 0, 1, 1], [], []>} : vector<4x64xf32>, vector<64x256xf32>, vector<4x256xf32> -> vector<4x256xf32>
    %c0_4 = arith.constant 0 : index
    %c0_5 = arith.constant 0 : index
    %4 = vector.load %arg3[%c0_4, %c0_5] : memref<4x1xf32, #tpu.memory_space<vmem>>, vector<4x1xf32>
    %5 = vector.broadcast %4 : vector<4x1xf32> to vector<4x256xf32>
    %6 = arith.addf %3, %5 : vector<4x256xf32>
    %cst_6 = arith.constant 0.000000e+00 : f32
    %7 = vector.broadcast %cst_6 : f32 to vector<4x256xf32>
    %8 = arith.maximumf %6, %7 : vector<4x256xf32>
    %9 = vector.extract_strided_slice %8 {offsets = [0, 188], sizes = [4, 68], strides = [1, 1]} : vector<4x256xf32> to vector<4x68xf32>
    %10 = vector.extract_strided_slice %8 {offsets = [0, 0], sizes = [4, 188], strides = [1, 1]} : vector<4x256xf32> to vector<4x188xf32>
    %11 = tpu.concatenate %9, %10 in 1 : vector<4x68xf32>, vector<4x188xf32> -> vector<4x256xf32>
    %c0_7 = arith.constant 0 : index
    %c0_8 = arith.constant 0 : index
    %c0_9 = arith.constant 0 : index
    %12 = vector.load %arg8[%c0_7, %c0_8, %c0_9] : memref<9x1x256xf32, #tpu.memory_space<vmem>>, vector<1x1x256xf32>
    %13 = vector.shape_cast %12 : vector<1x1x256xf32> to vector<1x256xf32>
    %14 = vector.broadcast %13 : vector<1x256xf32> to vector<4x256xf32>
    %15 = arith.mulf %11, %14 : vector<4x256xf32>
    %16 = vector.extract_strided_slice %8 {offsets = [0, 192], sizes = [4, 64], strides = [1, 1]} : vector<4x256xf32> to vector<4x64xf32>
    %17 = vector.extract_strided_slice %8 {offsets = [0, 0], sizes = [4, 192], strides = [1, 1]} : vector<4x256xf32> to vector<4x192xf32>
    %18 = tpu.concatenate %16, %17 in 1 : vector<4x64xf32>, vector<4x192xf32> -> vector<4x256xf32>
    %c1 = arith.constant 1 : index
    %c0_10 = arith.constant 0 : index
    %c0_11 = arith.constant 0 : index
    %19 = vector.load %arg8[%c1, %c0_10, %c0_11] : memref<9x1x256xf32, #tpu.memory_space<vmem>>, vector<1x1x256xf32>
    %20 = vector.shape_cast %19 : vector<1x1x256xf32> to vector<1x256xf32>
    %21 = vector.broadcast %20 : vector<1x256xf32> to vector<4x256xf32>
    %22 = arith.mulf %18, %21 : vector<4x256xf32>
    %23 = vector.extract_strided_slice %8 {offsets = [0, 196], sizes = [4, 60], strides = [1, 1]} : vector<4x256xf32> to vector<4x60xf32>
    %24 = vector.extract_strided_slice %8 {offsets = [0, 0], sizes = [4, 196], strides = [1, 1]} : vector<4x256xf32> to vector<4x196xf32>
    %25 = tpu.concatenate %23, %24 in 1 : vector<4x60xf32>, vector<4x196xf32> -> vector<4x256xf32>
    %c2 = arith.constant 2 : index
    %c0_12 = arith.constant 0 : index
    %c0_13 = arith.constant 0 : index
    %26 = vector.load %arg8[%c2, %c0_12, %c0_13] : memref<9x1x256xf32, #tpu.memory_space<vmem>>, vector<1x1x256xf32>
    %27 = vector.shape_cast %26 : vector<1x1x256xf32> to vector<1x256xf32>
    %28 = vector.broadcast %27 : vector<1x256xf32> to vector<4x256xf32>
    %29 = arith.mulf %25, %28 : vector<4x256xf32>
    %30 = vector.extract_strided_slice %8 {offsets = [0, 252], sizes = [4, 4], strides = [1, 1]} : vector<4x256xf32> to vector<4x4xf32>
    %31 = vector.extract_strided_slice %8 {offsets = [0, 0], sizes = [4, 252], strides = [1, 1]} : vector<4x256xf32> to vector<4x252xf32>
    %32 = tpu.concatenate %30, %31 in 1 : vector<4x4xf32>, vector<4x252xf32> -> vector<4x256xf32>
    %c3 = arith.constant 3 : index
    %c0_14 = arith.constant 0 : index
    %c0_15 = arith.constant 0 : index
    %33 = vector.load %arg8[%c3, %c0_14, %c0_15] : memref<9x1x256xf32, #tpu.memory_space<vmem>>, vector<1x1x256xf32>
    %34 = vector.shape_cast %33 : vector<1x1x256xf32> to vector<1x256xf32>
    %35 = vector.broadcast %34 : vector<1x256xf32> to vector<4x256xf32>
    %36 = arith.mulf %32, %35 : vector<4x256xf32>
    %37 = vector.extract_strided_slice %8 {offsets = [0, 4], sizes = [4, 252], strides = [1, 1]} : vector<4x256xf32> to vector<4x252xf32>
    %38 = vector.extract_strided_slice %8 {offsets = [0, 0], sizes = [4, 4], strides = [1, 1]} : vector<4x256xf32> to vector<4x4xf32>
    %39 = tpu.concatenate %37, %38 in 1 : vector<4x252xf32>, vector<4x4xf32> -> vector<4x256xf32>
    %c5 = arith.constant 5 : index
    %c0_16 = arith.constant 0 : index
    %c0_17 = arith.constant 0 : index
    %40 = vector.load %arg8[%c5, %c0_16, %c0_17] : memref<9x1x256xf32, #tpu.memory_space<vmem>>, vector<1x1x256xf32>
    %41 = vector.shape_cast %40 : vector<1x1x256xf32> to vector<1x256xf32>
    %42 = vector.broadcast %41 : vector<1x256xf32> to vector<4x256xf32>
    %43 = arith.mulf %39, %42 : vector<4x256xf32>
    %44 = vector.extract_strided_slice %8 {offsets = [0, 60], sizes = [4, 196], strides = [1, 1]} : vector<4x256xf32> to vector<4x196xf32>
    %45 = vector.extract_strided_slice %8 {offsets = [0, 0], sizes = [4, 60], strides = [1, 1]} : vector<4x256xf32> to vector<4x60xf32>
    %46 = tpu.concatenate %44, %45 in 1 : vector<4x196xf32>, vector<4x60xf32> -> vector<4x256xf32>
    %c6 = arith.constant 6 : index
    %c0_18 = arith.constant 0 : index
    %c0_19 = arith.constant 0 : index
    %47 = vector.load %arg8[%c6, %c0_18, %c0_19] : memref<9x1x256xf32, #tpu.memory_space<vmem>>, vector<1x1x256xf32>
    %48 = vector.shape_cast %47 : vector<1x1x256xf32> to vector<1x256xf32>
    %49 = vector.broadcast %48 : vector<1x256xf32> to vector<4x256xf32>
    %50 = arith.mulf %46, %49 : vector<4x256xf32>
    %51 = vector.extract_strided_slice %8 {offsets = [0, 64], sizes = [4, 192], strides = [1, 1]} : vector<4x256xf32> to vector<4x192xf32>
    %52 = vector.extract_strided_slice %8 {offsets = [0, 0], sizes = [4, 64], strides = [1, 1]} : vector<4x256xf32> to vector<4x64xf32>
    %53 = tpu.concatenate %51, %52 in 1 : vector<4x192xf32>, vector<4x64xf32> -> vector<4x256xf32>
    %c7 = arith.constant 7 : index
    %c0_20 = arith.constant 0 : index
    %c0_21 = arith.constant 0 : index
    %54 = vector.load %arg8[%c7, %c0_20, %c0_21] : memref<9x1x256xf32, #tpu.memory_space<vmem>>, vector<1x1x256xf32>
    %55 = vector.shape_cast %54 : vector<1x1x256xf32> to vector<1x256xf32>
    %56 = vector.broadcast %55 : vector<1x256xf32> to vector<4x256xf32>
    %57 = arith.mulf %53, %56 : vector<4x256xf32>
    %58 = vector.extract_strided_slice %8 {offsets = [0, 68], sizes = [4, 188], strides = [1, 1]} : vector<4x256xf32> to vector<4x188xf32>
    %59 = vector.extract_strided_slice %8 {offsets = [0, 0], sizes = [4, 68], strides = [1, 1]} : vector<4x256xf32> to vector<4x68xf32>
    %60 = tpu.concatenate %58, %59 in 1 : vector<4x188xf32>, vector<4x68xf32> -> vector<4x256xf32>
    %c8 = arith.constant 8 : index
    %c0_22 = arith.constant 0 : index
    %c0_23 = arith.constant 0 : index
    %61 = vector.load %arg8[%c8, %c0_22, %c0_23] : memref<9x1x256xf32, #tpu.memory_space<vmem>>, vector<1x1x256xf32>
    %62 = vector.shape_cast %61 : vector<1x1x256xf32> to vector<1x256xf32>
    %63 = vector.broadcast %62 : vector<1x256xf32> to vector<4x256xf32>
    %64 = arith.mulf %60, %63 : vector<4x256xf32>
    %65 = tpu.concatenate %15, %22, %29, %36, %8, %43, %50, %57, %64 in 0 : vector<4x256xf32>, vector<4x256xf32>, vector<4x256xf32>, vector<4x256xf32>, vector<4x256xf32>, vector<4x256xf32>, vector<4x256xf32>, vector<4x256xf32>, vector<4x256xf32> -> vector<36x256xf32>
    %c0_24 = arith.constant 0 : index
    %c0_25 = arith.constant 0 : index
    %c0_26 = arith.constant 0 : index
    %66 = vector.load %arg4[%c0_24, %c0_25, %c0_26] : memref<2x4x36xf32, #tpu.memory_space<vmem>>, vector<1x4x36xf32>
    %67 = vector.shape_cast %66 : vector<1x4x36xf32> to vector<4x36xf32>
    %cst_27 = arith.constant dense<0.000000e+00> : vector<4x256xf32>
    %68 = tpu.matmul %67, %65, %cst_27 {dimension_numbers = #tpu.dot_dimension_numbers<[1], [0], [0], [1], [0, 0, 1, 1], [], []>} : vector<4x36xf32>, vector<36x256xf32>, vector<4x256xf32> -> vector<4x256xf32>
    %c0_28 = arith.constant 0 : index
    %c0_29 = arith.constant 0 : index
    %c0_30 = arith.constant 0 : index
    %69 = vector.load %arg5[%c0_28, %c0_29, %c0_30] : memref<2x4x1xf32, #tpu.memory_space<vmem>>, vector<1x4x1xf32>
    %70 = vector.shape_cast %69 : vector<1x4x1xf32> to vector<4x1xf32>
    %71 = vector.broadcast %70 : vector<4x1xf32> to vector<4x256xf32>
    %72 = arith.addf %68, %71 : vector<4x256xf32>
    %cst_31 = arith.constant 0.000000e+00 : f32
    %73 = vector.broadcast %cst_31 : f32 to vector<4x256xf32>
    %74 = arith.maximumf %72, %73 : vector<4x256xf32>
    %75 = vector.extract_strided_slice %74 {offsets = [0, 188], sizes = [4, 68], strides = [1, 1]} : vector<4x256xf32> to vector<4x68xf32>
    %76 = vector.extract_strided_slice %74 {offsets = [0, 0], sizes = [4, 188], strides = [1, 1]} : vector<4x256xf32> to vector<4x188xf32>
    %77 = tpu.concatenate %75, %76 in 1 : vector<4x68xf32>, vector<4x188xf32> -> vector<4x256xf32>
    %c0_32 = arith.constant 0 : index
    %c0_33 = arith.constant 0 : index
    %c0_34 = arith.constant 0 : index
    %78 = vector.load %arg8[%c0_32, %c0_33, %c0_34] : memref<9x1x256xf32, #tpu.memory_space<vmem>>, vector<1x1x256xf32>
    %79 = vector.shape_cast %78 : vector<1x1x256xf32> to vector<1x256xf32>
    %80 = vector.broadcast %79 : vector<1x256xf32> to vector<4x256xf32>
    %81 = arith.mulf %77, %80 : vector<4x256xf32>
    %82 = vector.extract_strided_slice %74 {offsets = [0, 192], sizes = [4, 64], strides = [1, 1]} : vector<4x256xf32> to vector<4x64xf32>
    %83 = vector.extract_strided_slice %74 {offsets = [0, 0], sizes = [4, 192], strides = [1, 1]} : vector<4x256xf32> to vector<4x192xf32>
    %84 = tpu.concatenate %82, %83 in 1 : vector<4x64xf32>, vector<4x192xf32> -> vector<4x256xf32>
    %c1_35 = arith.constant 1 : index
    %c0_36 = arith.constant 0 : index
    %c0_37 = arith.constant 0 : index
    %85 = vector.load %arg8[%c1_35, %c0_36, %c0_37] : memref<9x1x256xf32, #tpu.memory_space<vmem>>, vector<1x1x256xf32>
    %86 = vector.shape_cast %85 : vector<1x1x256xf32> to vector<1x256xf32>
    %87 = vector.broadcast %86 : vector<1x256xf32> to vector<4x256xf32>
    %88 = arith.mulf %84, %87 : vector<4x256xf32>
    %89 = vector.extract_strided_slice %74 {offsets = [0, 196], sizes = [4, 60], strides = [1, 1]} : vector<4x256xf32> to vector<4x60xf32>
    %90 = vector.extract_strided_slice %74 {offsets = [0, 0], sizes = [4, 196], strides = [1, 1]} : vector<4x256xf32> to vector<4x196xf32>
    %91 = tpu.concatenate %89, %90 in 1 : vector<4x60xf32>, vector<4x196xf32> -> vector<4x256xf32>
    %c2_38 = arith.constant 2 : index
    %c0_39 = arith.constant 0 : index
    %c0_40 = arith.constant 0 : index
    %92 = vector.load %arg8[%c2_38, %c0_39, %c0_40] : memref<9x1x256xf32, #tpu.memory_space<vmem>>, vector<1x1x256xf32>
    %93 = vector.shape_cast %92 : vector<1x1x256xf32> to vector<1x256xf32>
    %94 = vector.broadcast %93 : vector<1x256xf32> to vector<4x256xf32>
    %95 = arith.mulf %91, %94 : vector<4x256xf32>
    %96 = vector.extract_strided_slice %74 {offsets = [0, 252], sizes = [4, 4], strides = [1, 1]} : vector<4x256xf32> to vector<4x4xf32>
    %97 = vector.extract_strided_slice %74 {offsets = [0, 0], sizes = [4, 252], strides = [1, 1]} : vector<4x256xf32> to vector<4x252xf32>
    %98 = tpu.concatenate %96, %97 in 1 : vector<4x4xf32>, vector<4x252xf32> -> vector<4x256xf32>
    %c3_41 = arith.constant 3 : index
    %c0_42 = arith.constant 0 : index
    %c0_43 = arith.constant 0 : index
    %99 = vector.load %arg8[%c3_41, %c0_42, %c0_43] : memref<9x1x256xf32, #tpu.memory_space<vmem>>, vector<1x1x256xf32>
    %100 = vector.shape_cast %99 : vector<1x1x256xf32> to vector<1x256xf32>
    %101 = vector.broadcast %100 : vector<1x256xf32> to vector<4x256xf32>
    %102 = arith.mulf %98, %101 : vector<4x256xf32>
    %103 = vector.extract_strided_slice %74 {offsets = [0, 4], sizes = [4, 252], strides = [1, 1]} : vector<4x256xf32> to vector<4x252xf32>
    %104 = vector.extract_strided_slice %74 {offsets = [0, 0], sizes = [4, 4], strides = [1, 1]} : vector<4x256xf32> to vector<4x4xf32>
    %105 = tpu.concatenate %103, %104 in 1 : vector<4x252xf32>, vector<4x4xf32> -> vector<4x256xf32>
    %c5_44 = arith.constant 5 : index
    %c0_45 = arith.constant 0 : index
    %c0_46 = arith.constant 0 : index
    %106 = vector.load %arg8[%c5_44, %c0_45, %c0_46] : memref<9x1x256xf32, #tpu.memory_space<vmem>>, vector<1x1x256xf32>
    %107 = vector.shape_cast %106 : vector<1x1x256xf32> to vector<1x256xf32>
    %108 = vector.broadcast %107 : vector<1x256xf32> to vector<4x256xf32>
    %109 = arith.mulf %105, %108 : vector<4x256xf32>
    %110 = vector.extract_strided_slice %74 {offsets = [0, 60], sizes = [4, 196], strides = [1, 1]} : vector<4x256xf32> to vector<4x196xf32>
    %111 = vector.extract_strided_slice %74 {offsets = [0, 0], sizes = [4, 60], strides = [1, 1]} : vector<4x256xf32> to vector<4x60xf32>
    %112 = tpu.concatenate %110, %111 in 1 : vector<4x196xf32>, vector<4x60xf32> -> vector<4x256xf32>
    %c6_47 = arith.constant 6 : index
    %c0_48 = arith.constant 0 : index
    %c0_49 = arith.constant 0 : index
    %113 = vector.load %arg8[%c6_47, %c0_48, %c0_49] : memref<9x1x256xf32, #tpu.memory_space<vmem>>, vector<1x1x256xf32>
    %114 = vector.shape_cast %113 : vector<1x1x256xf32> to vector<1x256xf32>
    %115 = vector.broadcast %114 : vector<1x256xf32> to vector<4x256xf32>
    %116 = arith.mulf %112, %115 : vector<4x256xf32>
    %117 = vector.extract_strided_slice %74 {offsets = [0, 64], sizes = [4, 192], strides = [1, 1]} : vector<4x256xf32> to vector<4x192xf32>
    %118 = vector.extract_strided_slice %74 {offsets = [0, 0], sizes = [4, 64], strides = [1, 1]} : vector<4x256xf32> to vector<4x64xf32>
    %119 = tpu.concatenate %117, %118 in 1 : vector<4x192xf32>, vector<4x64xf32> -> vector<4x256xf32>
    %c7_50 = arith.constant 7 : index
    %c0_51 = arith.constant 0 : index
    %c0_52 = arith.constant 0 : index
    %120 = vector.load %arg8[%c7_50, %c0_51, %c0_52] : memref<9x1x256xf32, #tpu.memory_space<vmem>>, vector<1x1x256xf32>
    %121 = vector.shape_cast %120 : vector<1x1x256xf32> to vector<1x256xf32>
    %122 = vector.broadcast %121 : vector<1x256xf32> to vector<4x256xf32>
    %123 = arith.mulf %119, %122 : vector<4x256xf32>
    %124 = vector.extract_strided_slice %74 {offsets = [0, 68], sizes = [4, 188], strides = [1, 1]} : vector<4x256xf32> to vector<4x188xf32>
    %125 = vector.extract_strided_slice %74 {offsets = [0, 0], sizes = [4, 68], strides = [1, 1]} : vector<4x256xf32> to vector<4x68xf32>
    %126 = tpu.concatenate %124, %125 in 1 : vector<4x188xf32>, vector<4x68xf32> -> vector<4x256xf32>
    %c8_53 = arith.constant 8 : index
    %c0_54 = arith.constant 0 : index
    %c0_55 = arith.constant 0 : index
    %127 = vector.load %arg8[%c8_53, %c0_54, %c0_55] : memref<9x1x256xf32, #tpu.memory_space<vmem>>, vector<1x1x256xf32>
    %128 = vector.shape_cast %127 : vector<1x1x256xf32> to vector<1x256xf32>
    %129 = vector.broadcast %128 : vector<1x256xf32> to vector<4x256xf32>
    %130 = arith.mulf %126, %129 : vector<4x256xf32>
    %131 = tpu.concatenate %81, %88, %95, %102, %74, %109, %116, %123, %130 in 0 : vector<4x256xf32>, vector<4x256xf32>, vector<4x256xf32>, vector<4x256xf32>, vector<4x256xf32>, vector<4x256xf32>, vector<4x256xf32>, vector<4x256xf32>, vector<4x256xf32> -> vector<36x256xf32>
    %c1_56 = arith.constant 1 : index
    %c0_57 = arith.constant 0 : index
    %c0_58 = arith.constant 0 : index
    %132 = vector.load %arg4[%c1_56, %c0_57, %c0_58] : memref<2x4x36xf32, #tpu.memory_space<vmem>>, vector<1x4x36xf32>
    %133 = vector.shape_cast %132 : vector<1x4x36xf32> to vector<4x36xf32>
    %cst_59 = arith.constant dense<0.000000e+00> : vector<4x256xf32>
    %134 = tpu.matmul %133, %131, %cst_59 {dimension_numbers = #tpu.dot_dimension_numbers<[1], [0], [0], [1], [0, 0, 1, 1], [], []>} : vector<4x36xf32>, vector<36x256xf32>, vector<4x256xf32> -> vector<4x256xf32>
    %c1_60 = arith.constant 1 : index
    %c0_61 = arith.constant 0 : index
    %c0_62 = arith.constant 0 : index
    %135 = vector.load %arg5[%c1_60, %c0_61, %c0_62] : memref<2x4x1xf32, #tpu.memory_space<vmem>>, vector<1x4x1xf32>
    %136 = vector.shape_cast %135 : vector<1x4x1xf32> to vector<4x1xf32>
    %137 = vector.broadcast %136 : vector<4x1xf32> to vector<4x256xf32>
    %138 = arith.addf %134, %137 : vector<4x256xf32>
    %cst_63 = arith.constant 0.000000e+00 : f32
    %139 = vector.broadcast %cst_63 : f32 to vector<4x256xf32>
    %140 = arith.maximumf %138, %139 : vector<4x256xf32>
    %c0_64 = arith.constant 0 : index
    %c0_65 = arith.constant 0 : index
    %141 = vector.load %arg6[%c0_64, %c0_65] : memref<1x4xf32, #tpu.memory_space<vmem>>, vector<1x4xf32>
    %cst_66 = arith.constant dense<0.000000e+00> : vector<1x256xf32>
    %142 = tpu.matmul %141, %140, %cst_66 {dimension_numbers = #tpu.dot_dimension_numbers<[1], [0], [0], [1], [0, 0, 1, 1], [], []>} : vector<1x4xf32>, vector<4x256xf32>, vector<1x256xf32> -> vector<1x256xf32>
    %c0_67 = arith.constant 0 : index
    %c0_68 = arith.constant 0 : index
    %143 = vector.load %arg7[%c0_67, %c0_68] : memref<1x1xf32, #tpu.memory_space<vmem>>, vector<1x1xf32>
    %144 = vector.broadcast %143 : vector<1x1xf32> to vector<1x256xf32>
    %145 = arith.addf %142, %144 : vector<1x256xf32>
    %146 = vector.shape_cast %145 : vector<1x256xf32> to vector<1x256xf32>
    %147 = vector.broadcast %146 : vector<1x256xf32> to vector<64x256xf32>
    %c0_69 = arith.constant 0 : index
    %c0_70 = arith.constant 0 : index
    %c0_71 = arith.constant 0 : index
    %148 = vector.load %arg9[%c0_69, %c0_70, %c0_71] : memref<1x64x256xf32, #tpu.memory_space<vmem>>, vector<1x64x256xf32>
    %149 = vector.shape_cast %148 : vector<1x64x256xf32> to vector<64x256xf32>
    %150 = vector.shape_cast %147 : vector<64x256xf32> to vector<1x64x256xf32>
    tpu.vector_store %arg9[%c0_69, %c0_70, %c0_71], %150 {strides = array<i32>} : memref<1x64x256xf32, #tpu.memory_space<vmem>>, vector<1x64x256xf32>,
    return
  }
  func.func @transform_0(%arg0: i32) -> (i32, i32, i32) {
    %c0_i32 = arith.constant 0 : i32
    %c0_i32_0 = arith.constant 0 : i32
    %c0_i32_1 = arith.constant 0 : i32
    return %arg0, %c0_i32, %c0_i32_0 : i32, i32, i32
  }
  func.func @transform_1(%arg0: i32) -> (i32, i32) {
    %c0_i32 = arith.constant 0 : i32
    %c0_i32_0 = arith.constant 0 : i32
    %c0_i32_1 = arith.constant 0 : i32
    return %c0_i32, %c0_i32_0 : i32, i32
  }
  func.func @transform_2(%arg0: i32) -> (i32, i32) {
    %c0_i32 = arith.constant 0 : i32
    %c0_i32_0 = arith.constant 0 : i32
    %c0_i32_1 = arith.constant 0 : i32
    return %c0_i32, %c0_i32_0 : i32, i32
  }
  func.func @transform_3(%arg0: i32) -> (i32, i32, i32) {
    %c0_i32 = arith.constant 0 : i32
    %c0_i32_0 = arith.constant 0 : i32
    %c0_i32_1 = arith.constant 0 : i32
    %c0_i32_2 = arith.constant 0 : i32
    return %c0_i32, %c0_i32_0, %c0_i32_1 : i32, i32, i32
  }
  func.func @transform_4(%arg0: i32) -> (i32, i32, i32) {
    %c0_i32 = arith.constant 0 : i32
    %c0_i32_0 = arith.constant 0 : i32
    %c0_i32_1 = arith.constant 0 : i32
    %c0_i32_2 = arith.constant 0 : i32
    return %c0_i32, %c0_i32_0, %c0_i32_1 : i32, i32, i32
  }
  func.func @transform_5(%arg0: i32) -> (i32, i32) {
    %c0_i32 = arith.constant 0 : i32
    %c0_i32_0 = arith.constant 0 : i32
    %c0_i32_1 = arith.constant 0 : i32
    return %c0_i32, %c0_i32_0 : i32, i32
  }
  func.func @transform_6(%arg0: i32) -> (i32, i32) {
    %c0_i32 = arith.constant 0 : i32
    %c0_i32_0 = arith.constant 0 : i32
    %c0_i32_1 = arith.constant 0 : i32
    return %c0_i32, %c0_i32_0 : i32, i32
  }
  func.func @transform_7(%arg0: i32) -> (i32, i32, i32) {
    %c0_i32 = arith.constant 0 : i32
    %c0_i32_0 = arith.constant 0 : i32
    %c0_i32_1 = arith.constant 0 : i32
    %c0_i32_2 = arith.constant 0 : i32
    return %c0_i32, %c0_i32_0, %c0_i32_1 : i32, i32, i32
  }
  func.func @transform_8(%arg0: i32) -> (i32, i32, i32) {
    %c0_i32 = arith.constant 0 : i32
    %c0_i32_0 = arith.constant 0 : i32
    %c0_i32_1 = arith.constant 0 : i32
    return %arg0, %c0_i32, %c0_i32_0 : i32, i32, i32
  }
}

</mosaic_0001>

<llo_original>
// kernel: spatial_gate.1
$region0: #{spatial_gate.1}
  #allocation0 [shape = 'u32[]', space=smem, size = 0x4, offset = 0x4, fixed_abs, tag = 'smem constant byte address 0x4 - core index']
  #allocation1 [shape = 'u32[144,128]{1,0:T(1,128)}', space=vmem, size = 0x12000, scoped, tag = 'internal scratch']
  #allocation2 [shape = 'f32[1,1]{1,0:T(1,128)S(1)}', space=vmem, size = 0x200, scoped, tag = 'scoped memory for spatial_gate.1']
  %s0 = inlined_call_operand.vmem [shape: f32[2,64,256], index: 0, kind: input, shape index: {}]
  %s1 = inlined_call_operand.vmem [shape: f32[4,64], index: 1, kind: input, shape index: {}]
  %s2 = inlined_call_operand.vmem [shape: f32[4,1], index: 2, kind: input, shape index: {}]
  %s3 = inlined_call_operand.vmem [shape: f32[2,4,36], index: 3, kind: input, shape index: {}]
  %s4 = inlined_call_operand.vmem [shape: f32[2,4,1], index: 4, kind: input, shape index: {}]
  %s5 = inlined_call_operand.vmem [shape: f32[1,4], index: 5, kind: input, shape index: {}]
  %s6 = inlined_call_operand.<no memory space> [shape: f32[1,1], index: 6, kind: input, shape index: {}]
  %s7 = inlined_call_operand.vmem [shape: f32[9,1,256], index: 7, kind: input, shape index: {}]
  %s8 = inlined_call_operand.vmem [shape: f32[2,64,256], index: 8, kind: output, shape index: {}]
  %s9 = sld [smem:[#allocation0]]
  $region65: #{spatial_gate.1} parent=0
    _
  %s11 = ssub.s32 1, %s9
  %s12 = scalar_select 0, %s11, %s9
  %v13 = vstv %s6
  %14 = vst [vmem:[#allocation2] sm:$0x1] %v13
  loop: start=0, step=1, limit=4
  $region2: #{spatial_gate.1} parent=0 // loop_pre_header
    _
  $region3: #{spatial_gate.1} parent=0 // loop_header
    %s16 = sphi 0, %s20
    %p17 = scmp.ge.s32.totalorder %s16, 4
    %s26 = sphi 0, %s28
    %s29 = sphi 0, %s26
    %s30 = sphi 0, %s29
    %s46 = sphi 0, %s30
    %s50 = sphi 0, %s50
    %s52 = sphi 0, %s50
    %s53 = sphi 0, %s52
    %s67 = sphi 0, %s53
    %s71 = sphi 0, %s71
    %s73 = sphi 0, %s71
    %s74 = sphi 0, %s73
    %s88 = sphi 0, %s74
    %s92 = sphi 0, %s92
    %s94 = sphi 0, %s92
    %s95 = sphi 0, %s94
    %s109 = sphi 0, %s95
    %s113 = sphi 0, %s113
    %s115 = sphi 0, %s113
    %s116 = sphi 0, %s115
    %s130 = sphi 0, %s116
    %s134 = sphi 0, %s134
    %s136 = sphi 0, %s134
    %s137 = sphi 0, %s136
    %s151 = sphi 0, %s137
    %s155 = sphi 0, %s155
    %s157 = sphi 0, %s155
    %s158 = sphi 0, %s157
    %s172 = sphi 0, %s158
    %s176 = sphi 0, %s176
    %s178 = sphi 0, %s176
    %s179 = sphi 0, %s178
    %s193 = sphi 0, %s179
    %s199 = sphi 0, %s201
    %s202 = sphi 0, %s199
    %s203 = sphi 0, %s202
    %s219 = sphi 0, %s203
  $region4: #{spatial_gate.1} parent=0 // loop_header_branch
    %19 = sbr.rel (%p17) target = $region8
  $region5: #{spatial_gate.1} parent=0 // loop_body
    %s21 = ssub.s32 %s16, 1
    %s22 = ssub.s32 %s16, 2
    %s23 = sadd.s32 %s16, 1
    %s24 = ssub.s32 %s16, %s23
    %p25 = scmp.eq.s32.totalorder %s24, 0
    %s27 = sadd.s32 %s26, 1
    %s28 = scalar_select %p25, %s26, %s27
    %p31 = pneg %p25
    %p32 = scmp.eq.s32.totalorder %s16, 1
    %p33 = por %p31, %p32
    %p34 = scmp.ne.s32.totalorder %s26, %s29
    %p35 = scmp.eq.s32.totalorder %s16, 0
    %p36 = por %p34, %p35
    %p37 = scmp.ne.s32.totalorder %s26, %s29
    %p38 = scmp.eq.s32.totalorder %s21, 1
    %p39 = por %p37, %p38
    %p40 = scmp.ne.s32.totalorder %s29, %s30
    %p41 = scmp.eq.s32.totalorder %s21, 0
    %p42 = por %p40, %p41
    %p43 = scmp.ne.s32.totalorder %s29, %s30
    %p44 = scmp.eq.s32.totalorder %s22, 1
    %p45 = por %p43, %p44
    %p47 = scmp.ne.s32.totalorder %s30, %s46
    %p48 = scmp.eq.s32.totalorder %s22, 0
    %p49 = por %p47, %p48
    %s51 = sadd.s32 %s50, 1
    %p54 = scmp.eq.s32.totalorder %s16, 1
    %p55 = scmp.ne.s32.totalorder %s50, %s52
    %p56 = scmp.eq.s32.totalorder %s16, 0
    %p57 = por %p55, %p56
    %p58 = scmp.ne.s32.totalorder %s50, %s52
    %p59 = scmp.eq.s32.totalorder %s21, 1
    %p60 = por %p58, %p59
    %p61 = scmp.ne.s32.totalorder %s52, %s53
    %p62 = scmp.eq.s32.totalorder %s21, 0
    %p63 = por %p61, %p62
    %p64 = scmp.ne.s32.totalorder %s52, %s53
    %p65 = scmp.eq.s32.totalorder %s22, 1
    %p66 = por %p64, %p65
    %p68 = scmp.ne.s32.totalorder %s53, %s67
    %p69 = scmp.eq.s32.totalorder %s22, 0
    %p70 = por %p68, %p69
    %s72 = sadd.s32 %s71, 1
    %p75 = scmp.eq.s32.totalorder %s16, 1
    %p76 = scmp.ne.s32.totalorder %s71, %s73
    %p77 = scmp.eq.s32.totalorder %s16, 0
    %p78 = por %p76, %p77
    %p79 = scmp.ne.s32.totalorder %s71, %s73
    %p80 = scmp.eq.s32.totalorder %s21, 1
    %p81 = por %p79, %p80
    %p82 = scmp.ne.s32.totalorder %s73, %s74
    %p83 = scmp.eq.s32.totalorder %s21, 0
    %p84 = por %p82, %p83
    %p85 = scmp.ne.s32.totalorder %s73, %s74
    %p86 = scmp.eq.s32.totalorder %s22, 1
    %p87 = por %p85, %p86
    %p89 = scmp.ne.s32.totalorder %s74, %s88
    %p90 = scmp.eq.s32.totalorder %s22, 0
    %p91 = por %p89, %p90
    %s93 = sadd.s32 %s92, 1
    %p96 = scmp.eq.s32.totalorder %s16, 1
    %p97 = scmp.ne.s32.totalorder %s92, %s94
    %p98 = scmp.eq.s32.totalorder %s16, 0
    %p99 = por %p97, %p98
    %p100 = scmp.ne.s32.totalorder %s92, %s94
    %p101 = scmp.eq.s32.totalorder %s21, 1
    %p102 = por %p100, %p101
    %p103 = scmp.ne.s32.totalorder %s94, %s95
    %p104 = scmp.eq.s32.totalorder %s21, 0
    %p105 = por %p103, %p104
    %p106 = scmp.ne.s32.totalorder %s94, %s95
    %p107 = scmp.eq.s32.totalorder %s22, 1
    %p108 = por %p106, %p107
    %p110 = scmp.ne.s32.totalorder %s95, %s109
    %p111 = scmp.eq.s32.totalorder %s22, 0
    %p112 = por %p110, %p111
    %s114 = sadd.s32 %s113, 1
    %p117 = scmp.eq.s32.totalorder %s16, 1
    %p118 = scmp.ne.s32.totalorder %s113, %s115
    %p119 = scmp.eq.s32.totalorder %s16, 0
    %p120 = por %p118, %p119
    %p121 = scmp.ne.s32.totalorder %s113, %s115
    %p122 = scmp.eq.s32.totalorder %s21, 1
    %p123 = por %p121, %p122
    %p124 = scmp.ne.s32.totalorder %s115, %s116
    %p125 = scmp.eq.s32.totalorder %s21, 0
    %p126 = por %p124, %p125
    %p127 = scmp.ne.s32.totalorder %s115, %s116
    %p128 = scmp.eq.s32.totalorder %s22, 1
    %p129 = por %p127, %p128
    %p131 = scmp.ne.s32.totalorder %s116, %s130
    %p132 = scmp.eq.s32.totalorder %s22, 0
    %p133 = por %p131, %p132
    %s135 = sadd.s32 %s134, 1
    %p138 = scmp.eq.s32.totalorder %s16, 1
    %p139 = scmp.ne.s32.totalorder %s134, %s136
    %p140 = scmp.eq.s32.totalorder %s16, 0
    %p141 = por %p139, %p140
    %p142 = scmp.ne.s32.totalorder %s134, %s136
    %p143 = scmp.eq.s32.totalorder %s21, 1
    %p144 = por %p142, %p143
    %p145 = scmp.ne.s32.totalorder %s136, %s137
    %p146 = scmp.eq.s32.totalorder %s21, 0
    %p147 = por %p145, %p146
    %p148 = scmp.ne.s32.totalorder %s136, %s137
    %p149 = scmp.eq.s32.totalorder %s22, 1
    %p150 = por %p148, %p149
    %p152 = scmp.ne.s32.totalorder %s137, %s151
    %p153 = scmp.eq.s32.totalorder %s22, 0
    %p154 = por %p152, %p153
    %s156 = sadd.s32 %s155, 1
    %p159 = scmp.eq.s32.totalorder %s16, 1
    %p160 = scmp.ne.s32.totalorder %s155, %s157
    %p161 = scmp.eq.s32.totalorder %s16, 0
    %p162 = por %p160, %p161
    %p163 = scmp.ne.s32.totalorder %s155, %s157
    %p164 = scmp.eq.s32.totalorder %s21, 1
    %p165 = por %p163, %p164
    %p166 = scmp.ne.s32.totalorder %s157, %s158
    %p167 = scmp.eq.s32.totalorder %s21, 0
    %p168 = por %p166, %p167
    %p169 = scmp.ne.s32.totalorder %s157, %s158
    %p170 = scmp.eq.s32.totalorder %s22, 1
    %p171 = por %p169, %p170
    %p173 = scmp.ne.s32.totalorder %s158, %s172
    %p174 = scmp.eq.s32.totalorder %s22, 0
    %p175 = por %p173, %p174
    %s177 = sadd.s32 %s176, 1
    %p180 = scmp.eq.s32.totalorder %s16, 1
    %p181 = scmp.ne.s32.totalorder %s176, %s178
    %p182 = scmp.eq.s32.totalorder %s16, 0
    %p183 = por %p181, %p182
    %p184 = scmp.ne.s32.totalorder %s176, %s178
    %p185 = scmp.eq.s32.totalorder %s21, 1
    %p186 = por %p184, %p185
    %p187 = scmp.ne.s32.totalorder %s178, %s179
    %p188 = scmp.eq.s32.totalorder %s21, 0
    %p189 = por %p187, %p188
    %p190 = scmp.ne.s32.totalorder %s178, %s179
    %p191 = scmp.eq.s32.totalorder %s22, 1
    %p192 = por %p190, %p191
    %p194 = scmp.ne.s32.totalorder %s179, %s193
    %p195 = scmp.eq.s32.totalorder %s22, 0
    %p196 = por %p194, %p195
    %s197 = ssub.s32 %s16, %s23
    %p198 = scmp.eq.s32.totalorder %s197, 0
    %s200 = sadd.s32 %s199, 1
    %s201 = scalar_select %p198, %s199, %s200
    %p204 = pneg %p198
    %p205 = scmp.eq.s32.totalorder %s16, 1
    %p206 = por %p204, %p205
    %p207 = scmp.ne.s32.totalorder %s199, %s202
    %p208 = scmp.eq.s32.totalorder %s16, 0
    %p209 = por %p207, %p208
    %p210 = scmp.ne.s32.totalorder %s199, %s202
    %p211 = scmp.eq.s32.totalorder %s21, 1
    %p212 = por %p210, %p211
    %p213 = scmp.ne.s32.totalorder %s202, %s203
    %p214 = scmp.eq.s32.totalorder %s21, 0
    %p215 = por %p213, %p214
    %p216 = scmp.ne.s32.totalorder %s202, %s203
    %p217 = scmp.eq.s32.totalorder %s22, 1
    %p218 = por %p216, %p217
    %p220 = scmp.ne.s32.totalorder %s203, %s219
    %p221 = scmp.eq.s32.totalorder %s22, 0
    %p222 = por %p220, %p221
    %p223 = scmp.le.s32.totalorder 1, %s16
    %p224 = scmp.lt.s32.totalorder %s16, 3
    %p225 = pnand %p223, %p224
    %p226 = pneg %p225
    // Predicated region
    $region9: #{spatial_gate.1} parent=5 // pred_check
      _
    $region10: #{spatial_gate.1} parent=5 // pred_check_branch
      %228 = sbr.rel (%p225) target = $region12
    $region11: #{spatial_gate.1} parent=5 // pred_region
      %s229 = ssub.s32 %s16, 1
      // Predicated region
      $region13: #{spatial_gate.1} parent=11 // pred_check
        %p230 = pneg %p63
      $region14: #{spatial_gate.1} parent=11 // pred_check_branch
        %232 = sbr.rel (%p230) target = $region16
      $region15: #{spatial_gate.1} parent=11 // pred_region
        _
      $region16: #{spatial_gate.1} parent=11 // pred_fallthru
        _
      // Predicated region
      $region17: #{spatial_gate.1} parent=11 // pred_check
        %p233 = pneg %p84
      $region18: #{spatial_gate.1} parent=11 // pred_check_branch
        %235 = sbr.rel (%p233) target = $region20
      $region19: #{spatial_gate.1} parent=11 // pred_region
        _
      $region20: #{spatial_gate.1} parent=11 // pred_fallthru
        _
      // Predicated region
      $region21: #{spatial_gate.1} parent=11 // pred_check
        %p236 = pneg %p105
      $region22: #{spatial_gate.1} parent=11 // pred_check_branch
        %238 = sbr.rel (%p236) target = $region24
      $region23: #{spatial_gate.1} parent=11 // pred_region
        _
      $region24: #{spatial_gate.1} parent=11 // pred_fallthru
        _
      // Predicated region
      $region25: #{spatial_gate.1} parent=11 // pred_check
        %p239 = pneg %p126
      $region26: #{spatial_gate.1} parent=11 // pred_check_branch
        %241 = sbr.rel (%p239) target = $region28
      $region27: #{spatial_gate.1} parent=11 // pred_region
        _
      $region28: #{spatial_gate.1} parent=11 // pred_fallthru
        _
      // Predicated region
      $region29: #{spatial_gate.1} parent=11 // pred_check
        %p242 = pneg %p147
      $region30: #{spatial_gate.1} parent=11 // pred_check_branch
        %244 = sbr.rel (%p242) target = $region32
      $region31: #{spatial_gate.1} parent=11 // pred_region
        _
      $region32: #{spatial_gate.1} parent=11 // pred_fallthru
        _
      // Predicated region
      $region33: #{spatial_gate.1} parent=11 // pred_check
        %p245 = pneg %p168
      $region34: #{spatial_gate.1} parent=11 // pred_check_branch
        %247 = sbr.rel (%p245) target = $region36
      $region35: #{spatial_gate.1} parent=11 // pred_region
        _
      $region36: #{spatial_gate.1} parent=11 // pred_fallthru
        _
      // Predicated region
      $region37: #{spatial_gate.1} parent=11 // pred_check
        %p248 = pneg %p189
      $region38: #{spatial_gate.1} parent=11 // pred_check_branch
        %250 = sbr.rel (%p248) target = $region40
      $region39: #{spatial_gate.1} parent=11 // pred_region
        _
      $region40: #{spatial_gate.1} parent=11 // pred_fallthru
        _
    $region12: #{spatial_gate.1} parent=5 // pred_fallthru
      _
    %p251 = scmp.lt.s32.totalorder %s16, 2
    // Predicated region
    $region41: #{spatial_gate.1} parent=5 // pred_check
      %p252 = pneg %p251
    $region42: #{spatial_gate.1} parent=5 // pred_check_branch
      %254 = sbr.rel (%p252) target = $region44
    $region43: #{spatial_gate.1} parent=5 // pred_region
      // Predicated region
      $region45: #{spatial_gate.1} parent=43 // pred_check
        %p255 = pneg %p36
      $region46: #{spatial_gate.1} parent=43 // pred_check_branch
        %257 = sbr.rel (%p255) target = $region48
      $region47: #{spatial_gate.1} parent=43 // pred_region
        %p258 = scmp.lt.s32.totalorder %s16, 1
        %s259 = scalar_select %p258, %s16, 1
        %s260 = smul.addr %s259, 16
        %s261 = smul.addr %s260, 8
        %s262 = scalar_lea.vmem %s0, %s261
      $region48: #{spatial_gate.1} parent=43 // pred_fallthru
        _
    $region44: #{spatial_gate.1} parent=5 // pred_fallthru
      _
    %p263 = scmp.le.s32.totalorder 1, %s16
    %p264 = scmp.lt.s32.totalorder %s16, 3
    %p265 = pnand %p263, %p264
    %p266 = pneg %p265
    // Predicated region
    $region49: #{spatial_gate.1} parent=5 // pred_check
      _
    $region50: #{spatial_gate.1} parent=5 // pred_check_branch
      %268 = sbr.rel (%p265) target = $region52
    $region51: #{spatial_gate.1} parent=5 // pred_region
      %s269 = ssub.s32 %s16, 1
      %p270 = scmp.lt.s32.totalorder %s21, 1
      %s271 = scalar_select %p270, %s21, 1
      %s272 = smul.addr %s271, 16
      %s273 = smul.addr %s272, 8
      %s274 = scalar_lea.vmem %s0, %s273
      %p275 = pneg %p42
      %p276 = pneg %p39
      %p277 = pneg %p63
      %p278 = pneg %p60
      %p279 = pneg %p84
      %p280 = pneg %p81
      %p281 = pneg %p105
      %p282 = pneg %p102
      %p283 = pneg %p126
      %p284 = pneg %p123
      %p285 = pneg %p147
      %p286 = pneg %p144
      %p287 = pneg %p168
      %p288 = pneg %p165
      %p289 = pneg %p189
      %p290 = pneg %p186
      %p291 = pneg %p215
      %p292 = pneg %p212
      %p293 = scmp.lt.s32.totalorder %s21, 1
      %s294 = scalar_select %p293, %s21, 1
      %s295 = smul.addr %s294, 16
      %s296 = smul.addr %s295, 8
      %s297 = scalar_lea.vmem %s8, %s296
      %p298 = scmp.lt.s32.totalorder %s21, 1
      %s299 = scalar_select %p298, %s21, 1
      %s300 = smul.addr %s299, 16
      %s301 = smul.addr %s300, 8
      %s302 = scalar_lea.vmem %s0, %s301
      %p303 = scmp.lt.s32.totalorder %s21, 1
      %s304 = scalar_select %p303, %s21, 1
      %s305 = smul.addr %s304, 16
      %s306 = smul.addr %s305, 8
      %s307 = scalar_lea.vmem %s8, %s306
      %v308 = vld [vmem:[%s302] sm:$0xff]
      %v309 = vld [vmem:[%s302 + $0x8] sm:$0xff]
      %v310 = vld [vmem:[%s302 + $0x10] sm:$0xff]
      %v311 = vld [vmem:[%s302 + $0x18] sm:$0xff]
      %v312 = vld [vmem:[%s302 + $0x20] sm:$0xff]
      %v313 = vld [vmem:[%s302 + $0x28] sm:$0xff]
      %v314 = vld [vmem:[%s302 + $0x30] sm:$0xff]
      %v315 = vld [vmem:[%s302 + $0x38] sm:$0xff]
      %v316 = vld [vmem:[%s302 + $0x40] sm:$0xff]
      %v317 = vld [vmem:[%s302 + $0x48] sm:$0xff]
      %v318 = vld [vmem:[%s302 + $0x50] sm:$0xff]
      %v319 = vld [vmem:[%s302 + $0x58] sm:$0xff]
      %v320 = vld [vmem:[%s302 + $0x60] sm:$0xff]
      %v321 = vld [vmem:[%s302 + $0x68] sm:$0xff]
      %v322 = vld [vmem:[%s302 + $0x70] sm:$0xff]
      %v323 = vld [vmem:[%s302 + $0x78] sm:$0xff]
      %v324 = vld [vmem:[%s1] sm:$0xf]
      %v325 = vld [vmem:[%s2] sm:$0xf]
      %327 = vset.pattern.permute.xlu0 0
      %328 = vperm.xlu0 %327, %v325
      %v329 = vpop.permute.xlu0 %328
      %vm331 = vcmask 523264
      %v333 = vsel %vm331, %v324, 0
      %335 = vmatprep.subr.mxu0 0.0
      %336 = vmatpush1.msra.mxu0 0.0
      %337 = vmatprep.subr.mxu0 0.0
      %338 = vmatpush1.msra.mxu0 0.0
      %339 = vmatprep.subr.mxu0 0.0
      %340 = vmatpush1.msra.mxu0 0.0
      %341 = vmatprep.subr.mxu0 0.0
      %342 = vmatpush1.msra.mxu0 0.0
      %343 = vmatprep.subr.mxu0 0.0
      %344 = vmatpush1.msra.mxu0 0.0
      %345 = vmatprep.subr.mxu0 0.0
      %346 = vmatpush1.msra.mxu0 0.0
      %347 = vmatprep.subr.mxu0 0.0
      %348 = vmatpush1.msra.mxu0 0.0
      %349 = vmatprep.subr.mxu0 0.0
      %350 = vmatpush1.msra.mxu0 0.0
      %351 = vmatprep.subr.mxu0 %v323
      %352 = vmatpush1.msra.mxu0 %v322
      %353 = vmatprep.subr.mxu0 %v321
      %354 = vmatpush1.msra.mxu0 %v320
      %355 = vmatprep.subr.mxu0 %v319
      %356 = vmatpush1.msra.mxu0 %v318
      %357 = vmatprep.subr.mxu0 %v317
      %358 = vmatpush1.msra.mxu0 %v316
      %359 = vmatprep.subr.mxu0 %v315
      %360 = vmatpush1.msra.mxu0 %v314
      %361 = vmatprep.subr.mxu0 %v313
      %362 = vmatpush1.msra.mxu0 %v312
      %363 = vmatprep.subr.mxu0 %v311
      %364 = vmatpush1.msra.mxu0 %v310
      %365 = vmatprep.subr.mxu0 %v309
      %366 = vmatpush1.msra.mxu0 %v308
      %367 = vmatprep.subr.mxu0 0.0
      %368 = vmatpush2.msra.mxu0 0.0
      %369 = vmatprep.subr.mxu0 0.0
      %370 = vmatpush2.msra.mxu0 0.0
      %371 = vmatprep.subr.mxu0 0.0
      %372 = vmatpush2.msra.mxu0 0.0
      %373 = vmatprep.subr.mxu0 0.0
      %374 = vmatpush2.msra.mxu0 0.0
      %375 = vmatprep.subr.mxu0 0.0
      %376 = vmatpush2.msra.mxu0 0.0
      %377 = vmatprep.subr.mxu0 0.0
      %378 = vmatpush2.msra.mxu0 0.0
      %379 = vmatprep.subr.mxu0 0.0
      %380 = vmatpush2.msra.mxu0 0.0
      %381 = vmatprep.subr.mxu0 0.0
      %382 = vmatpush2.msra.mxu0 0.0
      %383 = vmatprep.subr.mxu0 0.0
      %384 = vmatpush2.msra.mxu0 0.0
      %385 = vmatprep.subr.mxu0 0.0
      %386 = vmatpush2.msra.mxu0 0.0
      %387 = vmatprep.subr.mxu0 0.0
      %388 = vmatpush2.msra.mxu0 0.0
      %389 = vmatprep.subr.mxu0 0.0
      %390 = vmatpush2.msra.mxu0 0.0
      %391 = vmatprep.subr.mxu0 0.0
      %392 = vmatpush2.msra.mxu0 0.0
      %393 = vmatprep.subr.mxu0 0.0
      %394 = vmatpush2.msra.mxu0 0.0
      %395 = vmatprep.subr.mxu0 0.0
      %396 = vmatpush2.msra.mxu0 0.0
      %397 = vmatprep.subr.mxu0 0.0
      %398 = vmatpush2.msra.mxu0 0.0
      %399 = vmatprep.mubr.f32.mxu0 0.0
      %400 = vmatmul.mubr.f32.gmra.mxu0 %v333
      %v401 = vpop.f32.mrf.mxu0
      %v402 = vadd.f32 %v329, %v401
      %v403 = vpop.f32.mrf.mxu0
      %v404 = vadd.f32 %v329, %v403
      %405 = vdwg.mxu0
      %v406 = vmax.f32 %v402, 0.0
      %v407 = vmax.f32 %v404, 0.0
      %409 = vrot.lane.b32.xlu0 %v407, 68
      %v410 = vpop.permute.xlu0 %409
      %413 = vrot.lane.b32.xlu0 %v406, 68
      %v414 = vpop.permute.xlu0 %413
      %vm415 = vcmask 556032
      %v416 = vsel %vm415, %v414, %v410
      %v419 = vsel %vm415, %v410, %v414
      %v420 = vld [vmem:[%s7] sm:$0x3]
      %v422 = vlaneseq
      %v423 = vshrl.u32 %v422, 7
      %v424 = vsub.s32 0, %v423
      %v425 = vrot.slane %v420, %v424
      %v426 = vlaneseq
      %v427 = vshrl.u32 %v426, 7
      %v428 = vsub.s32 1, %v427
      %v429 = vrot.slane %v420, %v428
      %v432 = vmul.f32 %v419, %v425
      %v433 = vmul.f32 %v416, %v429
      %434 = vrot.lane.b32.xlu0 %v407, 64
      %v435 = vpop.permute.xlu0 %434
      %437 = vrot.lane.b32.xlu0 %v406, 64
      %v438 = vpop.permute.xlu0 %437
      %v439 = vsel %vm331, %v438, %v435
      %v442 = vsel %vm331, %v435, %v438
      %s443 = scalar_lea.vmem %s7, 2
      %v444 = vld [vmem:[%s443] sm:$0x3]
      %v446 = vlaneseq
      %v447 = vshrl.u32 %v446, 7
      %v448 = vsub.s32 0, %v447
      %v449 = vrot.slane %v444, %v448
      %v450 = vlaneseq
      %v451 = vshrl.u32 %v450, 7
      %v452 = vsub.s32 1, %v451
      %v453 = vrot.slane %v444, %v452
      %v456 = vmul.f32 %v442, %v449
      %v457 = vmul.f32 %v439, %v453
      %458 = vrot.lane.b32.xlu0 %v407, 60
      %v459 = vpop.permute.xlu0 %458
      %461 = vrot.lane.b32.xlu0 %v406, 60
      %v462 = vpop.permute.xlu0 %461
      %vm463 = vcmask 490496
      %v464 = vsel %vm463, %v462, %v459
      %v467 = vsel %vm463, %v459, %v462
      %s468 = scalar_lea.vmem %s7, 4
      %v469 = vld [vmem:[%s468] sm:$0x3]
      %v471 = vlaneseq
      %v472 = vshrl.u32 %v471, 7
      %v473 = vsub.s32 0, %v472
      %v474 = vrot.slane %v469, %v473
      %v475 = vlaneseq
      %v476 = vshrl.u32 %v475, 7
      %v477 = vsub.s32 1, %v476
      %v478 = vrot.slane %v469, %v477
      %v481 = vmul.f32 %v467, %v474
      %v482 = vmul.f32 %v464, %v478
      %483 = vrot.lane.b32.xlu0 %v407, 4
      %v484 = vpop.permute.xlu0 %483
      %486 = vrot.lane.b32.xlu0 %v406, 4
      %v487 = vpop.permute.xlu0 %486
      %vm488 = vcmask 31744
      %v489 = vsel %vm488, %v487, %v484
      %v492 = vsel %vm488, %v484, %v487
      %s493 = scalar_lea.vmem %s7, 6
      %v494 = vld [vmem:[%s493] sm:$0x3]
      %v496 = vlaneseq
      %v497 = vshrl.u32 %v496, 7
      %v498 = vsub.s32 0, %v497
      %v499 = vrot.slane %v494, %v498
      %v500 = vlaneseq
      %v501 = vshrl.u32 %v500, 7
      %v502 = vsub.s32 1, %v501
      %v503 = vrot.slane %v494, %v502
      %v506 = vmul.f32 %v492, %v499
      %v507 = vmul.f32 %v489, %v503
      %508 = vrot.lane.b32.xlu0 %v406, 124
      %v509 = vpop.permute.xlu0 %508
      %510 = vrot.lane.b32.xlu0 %v407, 124
      %v511 = vpop.permute.xlu0 %510
      %vm512 = vcmask 1014784
      %v513 = vsel %vm512, %v509, %v511
      %v517 = vsel %vm512, %v511, %v509
      %s518 = scalar_lea.vmem %s7, 10
      %v519 = vld [vmem:[%s518] sm:$0x3]
      %v521 = vlaneseq
      %v522 = vshrl.u32 %v521, 7
      %v523 = vsub.s32 0, %v522
      %v524 = vrot.slane %v519, %v523
      %v525 = vlaneseq
      %v526 = vshrl.u32 %v525, 7
      %v527 = vsub.s32 1, %v526
      %v528 = vrot.slane %v519, %v527
      %v531 = vmul.f32 %v513, %v524
      %v532 = vmul.f32 %v517, %v528
      %s533 = scalar_lea.vmem %s7, 12
      %v534 = vld [vmem:[%s533] sm:$0x3]
      %v536 = vlaneseq
      %v537 = vshrl.u32 %v536, 7
      %v538 = vsub.s32 0, %v537
      %v539 = vrot.slane %v534, %v538
      %v540 = vlaneseq
      %v541 = vshrl.u32 %v540, 7
      %v542 = vsub.s32 1, %v541
      %v543 = vrot.slane %v534, %v542
      %v546 = vmul.f32 %v416, %v539
      %v547 = vmul.f32 %v419, %v543
      %s548 = scalar_lea.vmem %s7, 14
      %v549 = vld [vmem:[%s548] sm:$0x3]
      %v551 = vlaneseq
      %v552 = vshrl.u32 %v551, 7
      %v553 = vsub.s32 0, %v552
      %v554 = vrot.slane %v549, %v553
      %v555 = vlaneseq
      %v556 = vshrl.u32 %v555, 7
      %v557 = vsub.s32 1, %v556
      %v558 = vrot.slane %v549, %v557
      %v561 = vmul.f32 %v439, %v554
      %v562 = vmul.f32 %v442, %v558
      %s563 = scalar_lea.vmem %s7, 16
      %v564 = vld [vmem:[%s563] sm:$0x3]
      %v566 = vlaneseq
      %v567 = vshrl.u32 %v566, 7
      %v568 = vsub.s32 0, %v567
      %v569 = vrot.slane %v564, %v568
      %v570 = vlaneseq
      %v571 = vshrl.u32 %v570, 7
      %v572 = vsub.s32 1, %v571
      %v573 = vrot.slane %v564, %v572
      %v576 = vmul.f32 %v464, %v569
      %v577 = vmul.f32 %v467, %v573
      %v580 = vrot.slane %v456, 4
      %v581 = vrot.slane %v457, 4
      %v586 = vrot.slane %v506, 4
      %v587 = vrot.slane %v507, 4
      %v592 = vrot.slane %v531, 4
      %v593 = vrot.slane %v532, 4
      %v598 = vrot.slane %v561, 4
      %v599 = vrot.slane %v562, 4
      %vm602 = vcmask 1043456
      %v603 = vsel %vm602, %v432, %v580
      %v604 = vsel %vm602, %v433, %v581
      %v605 = vsel %vm602, %v481, %v586
      %v606 = vsel %vm602, %v482, %v587
      %v607 = vsel %vm602, %v406, %v592
      %v608 = vsel %vm602, %v407, %v593
      %v609 = vsel %vm602, %v546, %v598
      %v610 = vsel %vm602, %v547, %v599
      %v611 = vld [vmem:[%s3] sm:$0xf]
      %v612 = vld [vmem:[%s4] sm:$0xf]
      %614 = vset.pattern.permute.xlu0 0
      %615 = vperm.xlu0 %614, %v612
      %v616 = vpop.permute.xlu0 %615
      %vm618 = vcmask 293888
      %v620 = vsel %vm618, %v611, 0
      %v623 = vsel %vm602, %v576, 0
      %v626 = vsel %vm602, %v577, 0
      %628 = vmatprep.subr.mxu0 0.0
      %629 = vmatpush1.msra.mxu0 0.0
      %630 = vmatprep.subr.mxu0 0.0
      %631 = vmatpush1.msra.mxu0 0.0
      %632 = vmatprep.subr.mxu0 0.0
      %633 = vmatpush1.msra.mxu0 0.0
      %634 = vmatprep.subr.mxu0 0.0
      %635 = vmatpush1.msra.mxu0 0.0
      %636 = vmatprep.subr.mxu0 0.0
      %637 = vmatpush1.msra.mxu0 0.0
      %638 = vmatprep.subr.mxu0 0.0
      %639 = vmatpush1.msra.mxu0 0.0
      %640 = vmatprep.subr.mxu0 0.0
      %641 = vmatpush1.msra.mxu0 0.0
      %642 = vmatprep.subr.mxu0 0.0
      %643 = vmatpush1.msra.mxu0 0.0
      %644 = vmatprep.subr.mxu0 0.0
      %645 = vmatpush1.msra.mxu0 0.0
      %646 = vmatprep.subr.mxu0 0.0
      %647 = vmatpush1.msra.mxu0 0.0
      %648 = vmatprep.subr.mxu0 0.0
      %649 = vmatpush1.msra.mxu0 0.0
      %650 = vmatprep.subr.mxu0 %v626
      %651 = vmatpush1.msra.mxu0 %v623
      %652 = vmatprep.subr.mxu0 %v610
      %653 = vmatpush1.msra.mxu0 %v609
      %654 = vmatprep.subr.mxu0 %v608
      %655 = vmatpush1.msra.mxu0 %v607
      %656 = vmatprep.subr.mxu0 %v606
      %657 = vmatpush1.msra.mxu0 %v605
      %658 = vmatprep.subr.mxu0 %v604
      %659 = vmatpush1.msra.mxu0 %v603
      %660 = vmatprep.subr.mxu0 0.0
      %661 = vmatpush2.msra.mxu0 0.0
      %662 = vmatprep.subr.mxu0 0.0
      %663 = vmatpush2.msra.mxu0 0.0
      %664 = vmatprep.subr.mxu0 0.0
      %665 = vmatpush2.msra.mxu0 0.0
      %666 = vmatprep.subr.mxu0 0.0
      %667 = vmatpush2.msra.mxu0 0.0
      %668 = vmatprep.subr.mxu0 0.0
      %669 = vmatpush2.msra.mxu0 0.0
      %670 = vmatprep.subr.mxu0 0.0
      %671 = vmatpush2.msra.mxu0 0.0
      %672 = vmatprep.subr.mxu0 0.0
      %673 = vmatpush2.msra.mxu0 0.0
      %674 = vmatprep.subr.mxu0 0.0
      %675 = vmatpush2.msra.mxu0 0.0
      %676 = vmatprep.subr.mxu0 0.0
      %677 = vmatpush2.msra.mxu0 0.0
      %678 = vmatprep.subr.mxu0 0.0
      %679 = vmatpush2.msra.mxu0 0.0
      %680 = vmatprep.subr.mxu0 0.0
      %681 = vmatpush2.msra.mxu0 0.0
      %682 = vmatprep.subr.mxu0 0.0
      %683 = vmatpush2.msra.mxu0 0.0
      %684 = vmatprep.subr.mxu0 0.0
      %685 = vmatpush2.msra.mxu0 0.0
      %686 = vmatprep.subr.mxu0 0.0
      %687 = vmatpush2.msra.mxu0 0.0
      %688 = vmatprep.subr.mxu0 0.0
      %689 = vmatpush2.msra.mxu0 0.0
      %690 = vmatprep.subr.mxu0 0.0
      %691 = vmatpush2.msra.mxu0 0.0
      %692 = vmatprep.mubr.f32.mxu0 0.0
      %693 = vmatmul.mubr.f32.gmra.mxu0 %v620
      %v694 = vpop.f32.mrf.mxu0
      %v695 = vadd.f32 %v616, %v694
      %v696 = vpop.f32.mrf.mxu0
      %v697 = vadd.f32 %v616, %v696
      %698 = vdwg.mxu0
      %v699 = vmax.f32 %v695, 0.0
      %v700 = vmax.f32 %v697, 0.0
      %702 = vrot.lane.b32.xlu0 %v700, 68
      %v703 = vpop.permute.xlu0 %702
      %706 = vrot.lane.b32.xlu0 %v699, 68
      %v707 = vpop.permute.xlu0 %706
      %v708 = vsel %vm415, %v707, %v703
      %v711 = vsel %vm415, %v703, %v707
      %v712 = vmul.f32 %v711, %v425
      %v713 = vmul.f32 %v708, %v429
      %714 = vrot.lane.b32.xlu0 %v700, 64
      %v715 = vpop.permute.xlu0 %714
      %717 = vrot.lane.b32.xlu0 %v699, 64
      %v718 = vpop.permute.xlu0 %717
      %v719 = vsel %vm331, %v718, %v715
      %v722 = vsel %vm331, %v715, %v718
      %v723 = vmul.f32 %v722, %v449
      %v724 = vmul.f32 %v719, %v453
      %725 = vrot.lane.b32.xlu0 %v700, 60
      %v726 = vpop.permute.xlu0 %725
      %728 = vrot.lane.b32.xlu0 %v699, 60
      %v729 = vpop.permute.xlu0 %728
      %v730 = vsel %vm463, %v729, %v726
      %v733 = vsel %vm463, %v726, %v729
      %v734 = vmul.f32 %v733, %v474
      %v735 = vmul.f32 %v730, %v478
      %736 = vrot.lane.b32.xlu0 %v700, 4
      %v737 = vpop.permute.xlu0 %736
      %739 = vrot.lane.b32.xlu0 %v699, 4
      %v740 = vpop.permute.xlu0 %739
      %v741 = vsel %vm488, %v740, %v737
      %v744 = vsel %vm488, %v737, %v740
      %v745 = vmul.f32 %v744, %v499
      %v746 = vmul.f32 %v741, %v503
      %747 = vrot.lane.b32.xlu0 %v699, 124
      %v748 = vpop.permute.xlu0 %747
      %749 = vrot.lane.b32.xlu0 %v700, 124
      %v750 = vpop.permute.xlu0 %749
      %v751 = vsel %vm512, %v748, %v750
      %v755 = vsel %vm512, %v750, %v748
      %v756 = vmul.f32 %v751, %v524
      %v757 = vmul.f32 %v755, %v528
      %v758 = vmul.f32 %v708, %v539
      %v759 = vmul.f32 %v711, %v543
      %v760 = vmul.f32 %v719, %v554
      %v761 = vmul.f32 %v722, %v558
      %v762 = vmul.f32 %v730, %v569
      %v763 = vmul.f32 %v733, %v573
      %v766 = vrot.slane %v723, 4
      %v767 = vrot.slane %v724, 4
      %v772 = vrot.slane %v745, 4
      %v773 = vrot.slane %v746, 4
      %v778 = vrot.slane %v756, 4
      %v779 = vrot.slane %v757, 4
      %v784 = vrot.slane %v760, 4
      %v785 = vrot.slane %v761, 4
      %v788 = vsel %vm602, %v712, %v766
      %v789 = vsel %vm602, %v713, %v767
      %v790 = vsel %vm602, %v734, %v772
      %v791 = vsel %vm602, %v735, %v773
      %v792 = vsel %vm602, %v699, %v778
      %v793 = vsel %vm602, %v700, %v779
      %v794 = vsel %vm602, %v758, %v784
      %v795 = vsel %vm602, %v759, %v785
      %s796 = scalar_lea.vmem %s3, 4
      %v797 = vld [vmem:[%s796] sm:$0xf]
      %s798 = scalar_lea.vmem %s4, 4
      %v799 = vld [vmem:[%s798] sm:$0xf]
      %801 = vset.pattern.permute.xlu0 0
      %802 = vperm.xlu0 %801, %v799
      %v803 = vpop.permute.xlu0 %802
      %v806 = vsel %vm618, %v797, 0
      %v809 = vsel %vm602, %v762, 0
      %v812 = vsel %vm602, %v763, 0
      %814 = vmatprep.subr.mxu0 0.0
      %815 = vmatpush1.msra.mxu0 0.0
      %816 = vmatprep.subr.mxu0 0.0
      %817 = vmatpush1.msra.mxu0 0.0
      %818 = vmatprep.subr.mxu0 0.0
      %819 = vmatpush1.msra.mxu0 0.0
      %820 = vmatprep.subr.mxu0 0.0
      %821 = vmatpush1.msra.mxu0 0.0
      %822 = vmatprep.subr.mxu0 0.0
      %823 = vmatpush1.msra.mxu0 0.0
      %824 = vmatprep.subr.mxu0 0.0
      %825 = vmatpush1.msra.mxu0 0.0
      %826 = vmatprep.subr.mxu0 0.0
      %827 = vmatpush1.msra.mxu0 0.0
      %828 = vmatprep.subr.mxu0 0.0
      %829 = vmatpush1.msra.mxu0 0.0
      %830 = vmatprep.subr.mxu0 0.0
      %831 = vmatpush1.msra.mxu0 0.0
      %832 = vmatprep.subr.mxu0 0.0
      %833 = vmatpush1.msra.mxu0 0.0
      %834 = vmatprep.subr.mxu0 0.0
      %835 = vmatpush1.msra.mxu0 0.0
      %836 = vmatprep.subr.mxu0 %v812
      %837 = vmatpush1.msra.mxu0 %v809
      %838 = vmatprep.subr.mxu0 %v795
      %839 = vmatpush1.msra.mxu0 %v794
      %840 = vmatprep.subr.mxu0 %v793
      %841 = vmatpush1.msra.mxu0 %v792
      %842 = vmatprep.subr.mxu0 %v791
      %843 = vmatpush1.msra.mxu0 %v790
      %844 = vmatprep.subr.mxu0 %v789
      %845 = vmatpush1.msra.mxu0 %v788
      %846 = vmatprep.subr.mxu0 0.0
      %847 = vmatpush2.msra.mxu0 0.0
      %848 = vmatprep.subr.mxu0 0.0
      %849 = vmatpush2.msra.mxu0 0.0
      %850 = vmatprep.subr.mxu0 0.0
      %851 = vmatpush2.msra.mxu0 0.0
      %852 = vmatprep.subr.mxu0 0.0
      %853 = vmatpush2.msra.mxu0 0.0
      %854 = vmatprep.subr.mxu0 0.0
      %855 = vmatpush2.msra.mxu0 0.0
      %856 = vmatprep.subr.mxu0 0.0
      %857 = vmatpush2.msra.mxu0 0.0
      %858 = vmatprep.subr.mxu0 0.0
      %859 = vmatpush2.msra.mxu0 0.0
      %860 = vmatprep.subr.mxu0 0.0
      %861 = vmatpush2.msra.mxu0 0.0
      %862 = vmatprep.subr.mxu0 0.0
      %863 = vmatpush2.msra.mxu0 0.0
      %864 = vmatprep.subr.mxu0 0.0
      %865 = vmatpush2.msra.mxu0 0.0
      %866 = vmatprep.subr.mxu0 0.0
      %867 = vmatpush2.msra.mxu0 0.0
      %868 = vmatprep.subr.mxu0 0.0
      %869 = vmatpush2.msra.mxu0 0.0
      %870 = vmatprep.subr.mxu0 0.0
      %871 = vmatpush2.msra.mxu0 0.0
      %872 = vmatprep.subr.mxu0 0.0
      %873 = vmatpush2.msra.mxu0 0.0
      %874 = vmatprep.subr.mxu0 0.0
      %875 = vmatpush2.msra.mxu0 0.0
      %876 = vmatprep.subr.mxu0 0.0
      %877 = vmatpush2.msra.mxu0 0.0
      %878 = vmatprep.mubr.f32.mxu0 0.0
      %879 = vmatmul.mubr.f32.gmra.mxu0 %v806
      %v880 = vpop.f32.mrf.mxu0
      %v881 = vadd.f32 %v803, %v880
      %v882 = vpop.f32.mrf.mxu0
      %v883 = vadd.f32 %v803, %v882
      %884 = vdwg.mxu0
      %v885 = vmax.f32 %v881, 0.0
      %v886 = vmax.f32 %v883, 0.0
      %v887 = vld [vmem:[%s5] sm:$0x1]
      %v888 = vld [vmem:[#allocation2] sm:$0x1]
      %890 = vset.pattern.permute.xlu0 0
      %891 = vperm.xlu0 %890, %v888
      %v892 = vpop.permute.xlu0 %891
      %v894 = vlaneseq
      %v895 = vshrl.u32 %v894, 7
      %v896 = vsub.s32 0, %v895
      %v897 = vrot.slane %v892, %v896
      %v899 = vsel %vm488, %v887, 0
      %v902 = vsel %vm602, %v885, 0
      %v905 = vsel %vm602, %v886, 0
      %907 = vmatprep.subr.mxu0 0.0
      %908 = vmatpush1.msra.mxu0 0.0
      %909 = vmatprep.subr.mxu0 0.0
      %910 = vmatpush1.msra.mxu0 0.0
      %911 = vmatprep.subr.mxu0 0.0
      %912 = vmatpush1.msra.mxu0 0.0
      %913 = vmatprep.subr.mxu0 0.0
      %914 = vmatpush1.msra.mxu0 0.0
      %915 = vmatprep.subr.mxu0 0.0
      %916 = vmatpush1.msra.mxu0 0.0
      %917 = vmatprep.subr.mxu0 0.0
      %918 = vmatpush1.msra.mxu0 0.0
      %919 = vmatprep.subr.mxu0 0.0
      %920 = vmatpush1.msra.mxu0 0.0
      %921 = vmatprep.subr.mxu0 0.0
      %922 = vmatpush1.msra.mxu0 0.0
      %923 = vmatprep.subr.mxu0 0.0
      %924 = vmatpush1.msra.mxu0 0.0
      %925 = vmatprep.subr.mxu0 0.0
      %926 = vmatpush1.msra.mxu0 0.0
      %927 = vmatprep.subr.mxu0 0.0
      %928 = vmatpush1.msra.mxu0 0.0
      %929 = vmatprep.subr.mxu0 0.0
      %930 = vmatpush1.msra.mxu0 0.0
      %931 = vmatprep.subr.mxu0 0.0
      %932 = vmatpush1.msra.mxu0 0.0
      %933 = vmatprep.subr.mxu0 0.0
      %934 = vmatpush1.msra.mxu0 0.0
      %935 = vmatprep.subr.mxu0 0.0
      %936 = vmatpush1.msra.mxu0 0.0
      %937 = vmatprep.subr.mxu0 %v905
      %938 = vmatpush1.msra.mxu0 %v902
      %939 = vmatprep.subr.mxu0 0.0
      %940 = vmatpush2.msra.mxu0 0.0
      %941 = vmatprep.subr.mxu0 0.0
      %942 = vmatpush2.msra.mxu0 0.0
      %943 = vmatprep.subr.mxu0 0.0
      %944 = vmatpush2.msra.mxu0 0.0
      %945 = vmatprep.subr.mxu0 0.0
      %946 = vmatpush2.msra.mxu0 0.0
      %947 = vmatprep.subr.mxu0 0.0
      %948 = vmatpush2.msra.mxu0 0.0
      %949 = vmatprep.subr.mxu0 0.0
      %950 = vmatpush2.msra.mxu0 0.0
      %951 = vmatprep.subr.mxu0 0.0
      %952 = vmatpush2.msra.mxu0 0.0
      %953 = vmatprep.subr.mxu0 0.0
      %954 = vmatpush2.msra.mxu0 0.0
      %955 = vmatprep.subr.mxu0 0.0
      %956 = vmatpush2.msra.mxu0 0.0
      %957 = vmatprep.subr.mxu0 0.0
      %958 = vmatpush2.msra.mxu0 0.0
      %959 = vmatprep.subr.mxu0 0.0
      %960 = vmatpush2.msra.mxu0 0.0
      %961 = vmatprep.subr.mxu0 0.0
      %962 = vmatpush2.msra.mxu0 0.0
      %963 = vmatprep.subr.mxu0 0.0
      %964 = vmatpush2.msra.mxu0 0.0
      %965 = vmatprep.subr.mxu0 0.0
      %966 = vmatpush2.msra.mxu0 0.0
      %967 = vmatprep.subr.mxu0 0.0
      %968 = vmatpush2.msra.mxu0 0.0
      %969 = vmatprep.subr.mxu0 0.0
      %970 = vmatpush2.msra.mxu0 0.0
      %971 = vmatprep.mubr.f32.mxu0 0.0
      %972 = vmatmul.mubr.f32.gmra.mxu0 %v899
      %v973 = vpop.f32.mrf.mxu0
      %v974 = vadd.f32 %v897, %v973
      %v975 = vpop.f32.mrf.mxu0
      %v976 = vadd.f32 %v897, %v975
      %977 = vdwg.mxu0
      %v978 = vlaneseq
      %v979 = vshrl.u32 %v978, 7
      %v980 = vsub.s32 0, %v979
      %v981 = vrot.slane %v974, %v980
      %v982 = vlaneseq
      %v983 = vshrl.u32 %v982, 7
      %v984 = vsub.s32 0, %v983
      %v985 = vrot.slane %v976, %v984
      %986 = vst [vmem:[%s307] sm:$0xff] %v981
      %987 = vst [vmem:[%s307 + $0x8] sm:$0xff] %v985
      %988 = vst [vmem:[%s307 + $0x10] sm:$0xff] %v981
      %989 = vst [vmem:[%s307 + $0x18] sm:$0xff] %v985
      %990 = vst [vmem:[%s307 + $0x20] sm:$0xff] %v981
      %991 = vst [vmem:[%s307 + $0x28] sm:$0xff] %v985
      %992 = vst [vmem:[%s307 + $0x30] sm:$0xff] %v981
      %993 = vst [vmem:[%s307 + $0x38] sm:$0xff] %v985
      %994 = vst [vmem:[%s307 + $0x40] sm:$0xff] %v981
      %995 = vst [vmem:[%s307 + $0x48] sm:$0xff] %v985
      %996 = vst [vmem:[%s307 + $0x50] sm:$0xff] %v981
      %997 = vst [vmem:[%s307 + $0x58] sm:$0xff] %v985
      %998 = vst [vmem:[%s307 + $0x60] sm:$0xff] %v981
      %999 = vst [vmem:[%s307 + $0x68] sm:$0xff] %v985
      %1000 = vst [vmem:[%s307 + $0x70] sm:$0xff] %v981
      %1001 = vst [vmem:[%s307 + $0x78] sm:$0xff] %v985
      %p1002 = scmp.lt.s32.totalorder %s21, 1
      %s1003 = scalar_select %p1002, %s21, 1
      %s1004 = smul.addr %s1003, 16
      %s1005 = smul.addr %s1004, 8
      %s1006 = scalar_lea.vmem %s8, %s1005
      // Predicated region
      $region53: #{spatial_gate.1} parent=51 // pred_check
        %p1007 = pneg %p212
      $region54: #{spatial_gate.1} parent=51 // pred_check_branch
        %1009 = sbr.rel (%p1007) target = $region56
      $region55: #{spatial_gate.1} parent=51 // pred_region
        _
      $region56: #{spatial_gate.1} parent=51 // pred_fallthru
        _
    $region52: #{spatial_gate.1} parent=5 // pred_fallthru
      _
    %p1010 = scmp.le.s32.totalorder 2, %s16
    // Predicated region
    $region57: #{spatial_gate.1} parent=5 // pred_check
      %p1011 = pneg %p1010
    $region58: #{spatial_gate.1} parent=5 // pred_check_branch
      %1013 = sbr.rel (%p1011) target = $region60
    $region59: #{spatial_gate.1} parent=5 // pred_region
      %s1014 = ssub.s32 %s16, 2
      // Predicated region
      $region61: #{spatial_gate.1} parent=59 // pred_check
        %p1015 = pneg %p218
      $region62: #{spatial_gate.1} parent=59 // pred_check_branch
        %1017 = sbr.rel (%p1015) target = $region64
      $region63: #{spatial_gate.1} parent=59 // pred_region
        %p1018 = scmp.lt.s32.totalorder %s22, 1
        %s1019 = scalar_select %p1018, %s22, 1
        %s1020 = smul.addr %s1019, 16
        %s1021 = smul.addr %s1020, 8
        %s1022 = scalar_lea.vmem %s8, %s1021
      $region64: #{spatial_gate.1} parent=59 // pred_fallthru
        _
    $region60: #{spatial_gate.1} parent=5 // pred_fallthru
      _
  $region6: #{spatial_gate.1} parent=0 // loop_footer
    %s20 = sadd.s32 1, %s16
  $region7: #{spatial_gate.1} parent=0 // loop_footer_branch
    %15 = sbr.rel target = $region3
  $region8: #{spatial_gate.1} parent=0 // loop_exit
    _

</llo_original>
